<compile_context>
chip_gen: v6e
topology: v6e:2x2x1
jax: 0.10.0
libtpu: 0.0.40
codegen_flags: <defaults>
</compile_context>

<pallas_src>
import math

import jax
import jax.numpy as jnp
from jax.experimental import pallas as pl
from jax.experimental.pallas import tpu as pltpu


def _round_up(a, m):
    return (a + m - 1) // m * m


def _chip_config():
    """Generation-aware knobs (cores to balance, per-step bytes, VMEM budget)."""
    kind = ""
    try:
        kind = jax.devices()[0].device_kind.lower()
    except Exception:
        pass
    if "v7" in kind:
        # 2 TensorCores/chip, ~3.2 TB/s HBM, 64 MiB VMEM per core.
        return {"n_cores": 2, "step_bytes": 8 << 20, "vmem_cap": 48 << 20}
    # v5e / v6e: 1 TensorCore/chip, 128 MiB physical VMEM (scoped default is
    # much lower, so the explicit vmem_limit_bytes below still matters).
    return {"n_cores": 1, "step_bytes": 4 << 20, "vmem_cap": 64 << 20}


def _choose_group(d, c, w_itemsize, vmem_cap):
    """Rows packed per grouped row so the packed output last dim is a multiple
    of 128 (unmasked full-lane stores + dense output DMA)."""
    if c % 128 == 0:
        return 1
    g = 128 // math.gcd(c, 128)
    # kron(I_g, W) is double-buffered by the auto-pipeline; keep 2x its
    # footprint to at most ~1/4 of the VMEM budget so x/out tiles get the rest.
    if 2 * (g * d) * (g * c) * w_itemsize > vmem_cap // 4:
        # TODO(synk): for very large D*C, regroup (tile_m, C) -> (tile_g, g*C)
        # in-kernel instead of falling back to masked narrow-lane stores.
        return 1
    return g


def _choose_tile_g(n_g, grouped_row_bytes, w_bytes, cfg):
    """Row-tile (in grouped rows) for the 1-D streaming grid."""
    base = 8                                       # sublane granularity
    budget = cfg["vmem_cap"] - 2 * w_bytes - (2 << 20)
    budget = max(budget, 2 * base * grouped_row_bytes)
    # Per-step x+out byte target amortizes the ~0.35us/step overhead; capped by
    # half the remaining VMEM budget (x and out tiles are double-buffered).
    target = max(min(cfg["step_bytes"], budget // 2), base * grouped_row_bytes)
    tile_g = max(base, (target // max(grouped_row_bytes, 1)) // base * base)
    tile_g = min(tile_g, _round_up(n_g, base))
    # Multi-TensorCore chips: keep the ("parallel",) row axis load-balanced by
    # making the step count a multiple of the core count when possible.
    steps = pl.cdiv(n_g, tile_g)
    if cfg["n_cores"] > 1 and steps % cfg["n_cores"] != 0 and n_g > base:
        steps = _round_up(steps, cfg["n_cores"])
        tile_g = max(base, _round_up(pl.cdiv(n_g, steps), base))
    return tile_g


def _make_kernel(compute_dtype):
    def kernel(x_ref, w_ref, b_ref, o_ref):
        # One grid step == one large row-tile (covers many SplitEval chunks):
        #   o_tile = x_tile @ W + b, accumulated in f32 on the MXU.
        xt = x_ref[...]
        if compute_dtype is not None and xt.dtype != compute_dtype:
            xt = xt.astype(compute_dtype)   # in-kernel cast: MXU precision only
        y = jnp.dot(xt, w_ref[...], preferred_element_type=jnp.float32)
        o_ref[...] = (y + b_ref[...]).astype(o_ref.dtype)   # b is already f32
    return kernel


def _split_eval_impl(x, wb, bb, *, g, c, compute_dtype, cfg):
    n, _ = x.shape
    out_dtype = x.dtype
    dg, cg = wb.shape                       # (g*D, g*C)

    # Ragged batch: pad by < g rows only (never to a tile multiple); the row
    # grid itself is ragged and Pallas masks the last block's OOB rows.
    rem = n % g
    n_pad = (g - rem) if rem else 0
    xp = jnp.pad(x, ((0, n_pad), (0, 0))) if n_pad else x
    n_g = (n + n_pad) // g
    x_g = xp.reshape(n_g, dg)               # row-major regroup: free reshape

    grouped_row_bytes = dg * x.dtype.itemsize + cg * jnp.dtype(out_dtype).itemsize
    w_bytes = wb.size * wb.dtype.itemsize
    tile_g = _choose_tile_g(n_g, grouped_row_bytes, w_bytes, cfg)
    steps = pl.cdiv(n_g, tile_g)

    out_g = pl.pallas_call(
        _make_kernel(compute_dtype),
        out_shape=jax.ShapeDtypeStruct((n_g, cg), out_dtype),
        grid_spec=pltpu.PrefetchScalarGridSpec(
            num_scalar_prefetch=0,
            grid=(steps,),
            in_specs=[
                pl.BlockSpec((tile_g, dg), lambda i: (i, 0)),  # streamed x tile
                pl.BlockSpec((dg, cg), lambda i: (0, 0)),      # W: VMEM-resident
                pl.BlockSpec((1, cg), lambda i: (0, 0)),       # b: VMEM-resident
            ],
            out_specs=pl.BlockSpec((tile_g, cg), lambda i: (i, 0)),
        ),
        compiler_params=pltpu.CompilerParams(
            dimension_semantics=("parallel",),
            vmem_limit_bytes=cfg["vmem_cap"],
        ),
    )(x_g, wb, bb)

    out = out_g.reshape(n_g * g, c)         # free ungroup
    return out[:n] if n_pad else out


def make_split_eval(w, b, *, size, compute_dtype=None):
    """SplitEval(f=Linear(w, b), size).forward as a cached Pallas callable.

    `size` only defines PyTorch's chunk boundaries; for a per-row linear f the
    result is independent of the chunking, so tiles are sized for the hardware.
    Weight preprocessing (optional cast, block-diagonal kron for lane-dense
    stores) and the tiling policy are hoisted out of the per-call path.
    `compute_dtype=jnp.bfloat16` only changes the MXU input precision (x is
    streamed from HBM at its stored dtype either way).
    """
    # TODO(synk): if SplitEval is instantiated with an f that mixes rows within
    # a chunk (per-chunk statistics / normalization), tiles must align to
    # `size` boundaries; this implementation assumes a per-row linear f.
    assert size > 0
    d, c = w.shape
    assert b.shape[-1] == c
    cfg = _chip_config()

    cdt = jnp.dtype(compute_dtype) if compute_dtype is not None else None
    wdt = cdt if cdt is not None else w.dtype
    g = _choose_group(d, c, jnp.dtype(wdt).itemsize, cfg["vmem_cap"])

    wb = w.astype(wdt)
    bb = b.reshape(1, c).astype(jnp.float32)            # bias add stays f32
    if g > 1:
        # Block-diagonal weight: out_g[R, j*C + k] = sum_d x[g*R + j, d] W[d, k]
        wb = jnp.kron(jnp.eye(g, dtype=wb.dtype), wb)   # (g*D, g*C), built once
        bb = jnp.tile(bb, (1, g))                       # (1, g*C)

    @jax.jit
    def forward(x):
        assert x.ndim == 2 and x.shape[1] == d
        return _split_eval_impl(x, wb, bb, g=g, c=c, compute_dtype=cdt, cfg=cfg)

    return forward


def split_eval(x, w, b, *, size, compute_dtype=None):
    """One-shot convenience wrapper (prefer make_split_eval in an eval loop)."""
    return make_split_eval(w, b, size=size, compute_dtype=compute_dtype)(x)


if __name__ == "__main__":
    # Small shapes consistent with the module: batch N=36 split into chunks of
    # size=8 (ragged last chunk of 4 rows); f is a D=32 -> C=16 linear head.
    N, D, C = 36, 32, 16
    size = 8

    key = jax.random.PRNGKey(0)
    kx, kw, kb = jax.random.split(key, 3)
    x = jax.random.normal(kx, (N, D), dtype=jnp.float32)
    w = jax.random.normal(kw, (D, C), dtype=jnp.float32) * 0.1
    b = jax.random.normal(kb, (C,), dtype=jnp.float32) * 0.1

    fwd = make_split_eval(w, b, size=size)     # weight prep / tiling hoisted here
    out = jax.block_until_ready(fwd(x))

    # Reference: the literal SplitEval semantics (chunked apply + concat).
    ref = jnp.concatenate(
        [x[i:i + size] @ w + b for i in range(0, N, size)], axis=0
    )
    assert out.shape == (N, C)
    assert jnp.allclose(out, ref, atol=1e-5, rtol=1e-5)

    print("KERNEL_OK")
</pallas_src>

<mosaic_0001>
module attributes {stable_mosaic.version = 11 : i64} {
  func.func @kernel(%arg0: i32, %arg1: memref<8x256xf32, #tpu.memory_space<vmem>>, %arg2: memref<256x128xf32, #tpu.memory_space<vmem>>, %arg3: memref<1x128xf32, #tpu.memory_space<vmem>>, %arg4: memref<8x128xf32, #tpu.memory_space<vmem>>) attributes {dimension_semantics = [#tpu.dimension_semantics<parallel>], iteration_bounds = array<i64: 1>, scalar_prefetch = 0 : i64, scratch_operands = 0 : i64, tpu.core_type = #tpu.core_type<tc>, window_params = [{transform_indices = @transform_0, window_bounds = array<i64: 8, 256>}, {pipeline_mode = #tpu.pipeline_mode<synchronous>, transform_indices = @transform_1, window_bounds = array<i64: 256, 128>}, {pipeline_mode = #tpu.pipeline_mode<synchronous>, transform_indices = @transform_2, window_bounds = array<i64: 1, 128>}, {transform_indices = @transform_3, window_bounds = array<i64: 8, 128>}]} {
    %c0 = arith.constant 0 : index
    %c0_0 = arith.constant 0 : index
    %0 = vector.load %arg1[%c0, %c0_0] : memref<8x256xf32, #tpu.memory_space<vmem>>, vector<8x256xf32>
    %c0_1 = arith.constant 0 : index
    %c0_2 = arith.constant 0 : index
    %1 = vector.load %arg2[%c0_1, %c0_2] : memref<256x128xf32, #tpu.memory_space<vmem>>, vector<256x128xf32>
    %cst = arith.constant dense<0.000000e+00> : vector<8x128xf32>
    %2 = tpu.matmul %0, %1, %cst {dimension_numbers = #tpu.dot_dimension_numbers<[1], [0], [0], [1], [0, 0, 1, 1], [], []>} : vector<8x256xf32>, vector<256x128xf32>, vector<8x128xf32> -> vector<8x128xf32>
    %c0_3 = arith.constant 0 : index
    %c0_4 = arith.constant 0 : index
    %3 = vector.load %arg3[%c0_3, %c0_4] : memref<1x128xf32, #tpu.memory_space<vmem>>, vector<1x128xf32>
    %4 = vector.broadcast %3 : vector<1x128xf32> to vector<8x128xf32>
    %5 = arith.addf %2, %4 : vector<8x128xf32>
    %c0_5 = arith.constant 0 : index
    %c0_6 = arith.constant 0 : index
    %6 = vector.load %arg4[%c0_5, %c0_6] : memref<8x128xf32, #tpu.memory_space<vmem>>, vector<8x128xf32>
    tpu.vector_store %arg4[%c0_5, %c0_6], %5 {strides = array<i32>} : memref<8x128xf32, #tpu.memory_space<vmem>>, vector<8x128xf32>,
    return
  }
  func.func @transform_0(%arg0: i32) -> (i32, i32) {
    %c0_i32 = arith.constant 0 : i32
    %c0_i32_0 = arith.constant 0 : i32
    return %arg0, %c0_i32 : i32, i32
  }
  func.func @transform_1(%arg0: i32) -> (i32, i32) {
    %c0_i32 = arith.constant 0 : i32
    %c0_i32_0 = arith.constant 0 : i32
    %c0_i32_1 = arith.constant 0 : i32
    return %c0_i32, %c0_i32_0 : i32, i32
  }
  func.func @transform_2(%arg0: i32) -> (i32, i32) {
    %c0_i32 = arith.constant 0 : i32
    %c0_i32_0 = arith.constant 0 : i32
    %c0_i32_1 = arith.constant 0 : i32
    return %c0_i32, %c0_i32_0 : i32, i32
  }
  func.func @transform_3(%arg0: i32) -> (i32, i32) {
    %c0_i32 = arith.constant 0 : i32
    %c0_i32_0 = arith.constant 0 : i32
    return %arg0, %c0_i32 : i32, i32
  }
}

</mosaic_0001>

<llo_original>
// kernel: forward.1
$region0: #{forward.1}
  #allocation0 [shape = 'u32[]', space=smem, size = 0x4, offset = 0x4, fixed_abs, tag = 'smem constant byte address 0x4 - core index']
  #allocation1 [shape = 'u32[144,128]{1,0:T(1,128)}', space=vmem, size = 0x12000, scoped, tag = 'internal scratch']
  %s0 = inlined_call_operand.vmem [shape: f32[5,256], index: 0, kind: input, shape index: {}]
  %s1 = inlined_call_operand.hbm [shape: f32[256,128], index: 1, kind: input, shape index: {}]
  %s2 = inlined_call_operand.vmem [shape: f32[1,128], index: 2, kind: input, shape index: {}]
  %s3 = inlined_call_operand.vmem [shape: f32[5,128], index: 3, kind: output, shape index: {}]
  %s4 = sld [smem:[#allocation0]]
  $region26: #{forward.1} parent=0
    _
  %s6 = ssub.s32 1, %s4
  %s7 = scalar_select 0, %s6, %s4
  $region1: #{forward.1} parent=0
    #allocation2 [shape = 'u8[131072]{0}', space=vmem, size = 0x20000, scoped, tag = 'input window, operand 1, single buffered']
    #allocation3 [shape = 's32[1]{0}', space=sflag, size = 0x4, scoped, tag = 'scoped memory for forward.1']
    %8 = vsyncpa [#allocation3], 0
    // Predicated region
    $region2: #{forward.1} parent=1 // pred_check
      _
    $region3: #{forward.1} parent=1 // pred_check_branch
      %10 = sbr.rel (0) target = $region5
    $region4: #{forward.1} parent=1 // pred_region
      _
    $region5: #{forward.1} parent=1 // pred_fallthru
      _
    // Predicated region
    $region6: #{forward.1} parent=1 // pred_check
      _
    $region7: #{forward.1} parent=1 // pred_check_branch
      %12 = sbr.rel (0) target = $region9
    $region8: #{forward.1} parent=1 // pred_region
      %s14 = ssub.s32 4096, 4096
      %15 = vsyncadd [#allocation3], %s14
      %s16 = sshll.u32 [#allocation2], 4
      %s17 = int_to_ptr.vmem [resolvable:$true] %s16
      %22 = dma.hbm_to_vmem [thread:$0]  %s1, 4096, %s17, [#allocation3], 128, 128, 8
    $region9: #{forward.1} parent=1 // pred_fallthru
      _
    // Predicated region
    $region10: #{forward.1} parent=1 // pred_check
      _
    $region11: #{forward.1} parent=1 // pred_check_branch
      %24 = sbr.rel (0) target = $region13
    $region12: #{forward.1} parent=1 // pred_region
      _
    $region13: #{forward.1} parent=1 // pred_fallthru
      _
    // Predicated region
    $region14: #{forward.1} parent=1 // pred_check
      _
    $region15: #{forward.1} parent=1 // pred_check_branch
      %26 = sbr.rel (0) target = $region17
    $region16: #{forward.1} parent=1 // pred_region
      %27 = dma.done [#allocation3], 4096
    $region17: #{forward.1} parent=1 // pred_fallthru
      _
    %v28 = vld [vmem:[%s0] sm:$0xff]
    %v29 = vld [vmem:[%s0 + $0x8] sm:$0xff]
    %v30 = vld [vmem:[#allocation2] sm:$0xff]
    %v31 = vld [vmem:[#allocation2 + $0x8] sm:$0xff]
    %v32 = vld [vmem:[#allocation2 + $0x10] sm:$0xff]
    %v33 = vld [vmem:[#allocation2 + $0x18] sm:$0xff]
    %v34 = vld [vmem:[#allocation2 + $0x20] sm:$0xff]
    %v35 = vld [vmem:[#allocation2 + $0x28] sm:$0xff]
    %v36 = vld [vmem:[#allocation2 + $0x30] sm:$0xff]
    %v37 = vld [vmem:[#allocation2 + $0x38] sm:$0xff]
    %v38 = vld [vmem:[#allocation2 + $0x40] sm:$0xff]
    %v39 = vld [vmem:[#allocation2 + $0x48] sm:$0xff]
    %v40 = vld [vmem:[#allocation2 + $0x50] sm:$0xff]
    %v41 = vld [vmem:[#allocation2 + $0x58] sm:$0xff]
    %v42 = vld [vmem:[#allocation2 + $0x60] sm:$0xff]
    %v43 = vld [vmem:[#allocation2 + $0x68] sm:$0xff]
    %v44 = vld [vmem:[#allocation2 + $0x70] sm:$0xff]
    %v45 = vld [vmem:[#allocation2 + $0x78] sm:$0xff]
    %v46 = vld [vmem:[#allocation2 + $0x80] sm:$0xff]
    %v47 = vld [vmem:[#allocation2 + $0x88] sm:$0xff]
    %v48 = vld [vmem:[#allocation2 + $0x90] sm:$0xff]
    %v49 = vld [vmem:[#allocation2 + $0x98] sm:$0xff]
    %v50 = vld [vmem:[#allocation2 + $0xa0] sm:$0xff]
    %v51 = vld [vmem:[#allocation2 + $0xa8] sm:$0xff]
    %v52 = vld [vmem:[#allocation2 + $0xb0] sm:$0xff]
    %v53 = vld [vmem:[#allocation2 + $0xb8] sm:$0xff]
    %v54 = vld [vmem:[#allocation2 + $0xc0] sm:$0xff]
    %v55 = vld [vmem:[#allocation2 + $0xc8] sm:$0xff]
    %v56 = vld [vmem:[#allocation2 + $0xd0] sm:$0xff]
    %v57 = vld [vmem:[#allocation2 + $0xd8] sm:$0xff]
    %v58 = vld [vmem:[#allocation2 + $0xe0] sm:$0xff]
    %v59 = vld [vmem:[#allocation2 + $0xe8] sm:$0xff]
    %v60 = vld [vmem:[#allocation2 + $0xf0] sm:$0xff]
    %v61 = vld [vmem:[#allocation2 + $0xf8] sm:$0xff]
    %v62 = vld [vmem:[%s2] sm:$0x1]
    %v64 = vlaneseq
    %v65 = vshrl.u32 %v64, 7
    %v66 = vsub.s32 0, %v65
    %v67 = vrot.slane %v62, %v66
    %69 = vmatprep.subr.mxu0 0.0
    %70 = vmatpush1.msra.mxu0 %v45
    %71 = vmatprep.subr.mxu0 0.0
    %72 = vmatpush1.msra.mxu0 %v44
    %73 = vmatprep.subr.mxu0 0.0
    %74 = vmatpush1.msra.mxu0 %v43
    %75 = vmatprep.subr.mxu0 0.0
    %76 = vmatpush1.msra.mxu0 %v42
    %77 = vmatprep.subr.mxu0 0.0
    %78 = vmatpush1.msra.mxu0 %v41
    %79 = vmatprep.subr.mxu0 0.0
    %80 = vmatpush1.msra.mxu0 %v40
    %81 = vmatprep.subr.mxu0 0.0
    %82 = vmatpush1.msra.mxu0 %v39
    %83 = vmatprep.subr.mxu0 0.0
    %84 = vmatpush1.msra.mxu0 %v38
    %85 = vmatprep.subr.mxu0 0.0
    %86 = vmatpush1.msra.mxu0 %v37
    %87 = vmatprep.subr.mxu0 0.0
    %88 = vmatpush1.msra.mxu0 %v36
    %89 = vmatprep.subr.mxu0 0.0
    %90 = vmatpush1.msra.mxu0 %v35
    %91 = vmatprep.subr.mxu0 0.0
    %92 = vmatpush1.msra.mxu0 %v34
    %93 = vmatprep.subr.mxu0 0.0
    %94 = vmatpush1.msra.mxu0 %v33
    %95 = vmatprep.subr.mxu0 0.0
    %96 = vmatpush1.msra.mxu0 %v32
    %97 = vmatprep.subr.mxu0 0.0
    %98 = vmatpush1.msra.mxu0 %v31
    %99 = vmatprep.subr.mxu0 0.0
    %100 = vmatpush1.msra.mxu0 %v30
    %101 = vmatprep.subr.mxu0 0.0
    %102 = vmatpush2.msra.mxu0 %v61
    %103 = vmatprep.subr.mxu0 0.0
    %104 = vmatpush2.msra.mxu0 %v60
    %105 = vmatprep.subr.mxu0 0.0
    %106 = vmatpush2.msra.mxu0 %v59
    %107 = vmatprep.subr.mxu0 0.0
    %108 = vmatpush2.msra.mxu0 %v58
    %109 = vmatprep.subr.mxu0 0.0
    %110 = vmatpush2.msra.mxu0 %v57
    %111 = vmatprep.subr.mxu0 0.0
    %112 = vmatpush2.msra.mxu0 %v56
    %113 = vmatprep.subr.mxu0 0.0
    %114 = vmatpush2.msra.mxu0 %v55
    %115 = vmatprep.subr.mxu0 0.0
    %116 = vmatpush2.msra.mxu0 %v54
    %117 = vmatprep.subr.mxu0 0.0
    %118 = vmatpush2.msra.mxu0 %v53
    %119 = vmatprep.subr.mxu0 0.0
    %120 = vmatpush2.msra.mxu0 %v52
    %121 = vmatprep.subr.mxu0 0.0
    %122 = vmatpush2.msra.mxu0 %v51
    %123 = vmatprep.subr.mxu0 0.0
    %124 = vmatpush2.msra.mxu0 %v50
    %125 = vmatprep.subr.mxu0 0.0
    %126 = vmatpush2.msra.mxu0 %v49
    %127 = vmatprep.subr.mxu0 0.0
    %128 = vmatpush2.msra.mxu0 %v48
    %129 = vmatprep.subr.mxu0 0.0
    %130 = vmatpush2.msra.mxu0 %v47
    %131 = vmatprep.subr.mxu0 0.0
    %132 = vmatpush2.msra.mxu0 %v46
    %133 = vmatprep.mubr.f32.mxu0 %v29
    %134 = vmatmul.mubr.f32.gmra.mxu0 %v28
    %v135 = vpop.f32.mrf.mxu0
    %v136 = vadd.f32 %v67, %v135
    %v137 = vpop.f32.mrf.mxu0
    %138 = vdwg.mxu0
    %139 = vst [vmem:[%s3] sm:$0xff] %v136
    // Predicated region
    $region18: #{forward.1} parent=1 // pred_check
      _
    $region19: #{forward.1} parent=1 // pred_check_branch
      %141 = sbr.rel (0) target = $region21
    $region20: #{forward.1} parent=1 // pred_region
      _
    $region21: #{forward.1} parent=1 // pred_fallthru
      _
    // Predicated region
    $region22: #{forward.1} parent=1 // pred_check
      _
    $region23: #{forward.1} parent=1 // pred_check_branch
      %143 = sbr.rel (0) target = $region25
    $region24: #{forward.1} parent=1 // pred_region
      _
    $region25: #{forward.1} parent=1 // pred_fallthru
      _
    %144 = vsyncpa [#allocation3], 1

</llo_original>
